<compile_context>
chip_gen: v7x
topology: tpu7x:2x2x1
jax: 0.10.0
libtpu: 0.0.40
codegen_flags: <defaults>
</compile_context>

<pallas_src>
import jax
import jax.numpy as jnp
from jax.experimental import pallas as pl
from jax.experimental.pallas import tpu as pltpu


def _mlp_kernel(y_ref, w1_ref, b1_ref, w2_ref, b2_ref, o_ref):
    # Lane-dense: batch on the lane axis.
    y = y_ref[...].astype(jnp.float32)       # [2, BLK]
    w1 = w1_ref[...]                         # [50, 2]  (out, in)  == torch layout
    b1 = b1_ref[...]                         # [50, 1]
    w2 = w2_ref[...]                         # [50, 2]  (in, out)
    b2 = b2_ref[...]                         # [2, 1]

    # Layer 1: K=2 contraction as two broadcast FMAs on the VPU (MXU-free).
    h = w1[:, 0:1] * y[0:1, :] + w1[:, 1:2] * y[1:2, :]          # [50, BLK]
    h = jnp.tanh(h + b1)                                         # bias: lane bcast

    # Layer 2: N=2 output as two 50-term sublane reductions (XLU), MXU-free.
    o0 = jnp.sum(h * w2[:, 0:1], axis=0, keepdims=True) + b2[0:1, :]   # [1, BLK]
    o1 = jnp.sum(h * w2[:, 1:2], axis=0, keepdims=True) + b2[1:2, :]   # [1, BLK]
    o_ref[0:1, :] = o0.astype(o_ref.dtype)
    o_ref[1:2, :] = o1.astype(o_ref.dtype)


def _pick_block(batch, blk_max=1024):
    """Whole batch if small; else the largest 128-multiple divisor <= blk_max."""
    if batch <= blk_max:
        return batch
    for cand in range(blk_max - blk_max % 128, 0, -128):
        if batch % cand == 0:
            return cand
    return batch   # oddly-sized large batch: fall back to a single big block


def ode_func_base(t, y, params, *, blk_max=1024):
    """Pallas equivalent of ODEFunc_base.forward(t, y). `t` is ignored."""
    del t
    w1, b1, w2, b2 = params
    batch = y.shape[0]
    blk = _pick_block(batch, blk_max)
    y_t = y.T                                  # [2, B] lane-dense (layout plumbing)

    out_t = pl.pallas_call(
        _mlp_kernel,
        out_shape=jax.ShapeDtypeStruct((2, batch), y.dtype),
        grid=(pl.cdiv(batch, blk),),
        in_specs=[
            pl.BlockSpec((2, blk), lambda i: (0, i)),     # y^T: streamed per block
            pl.BlockSpec(w1.shape, lambda i: (0, 0)),     # weights/biases: constant
            pl.BlockSpec(b1.shape, lambda i: (0, 0)),     #   index maps -> stay
            pl.BlockSpec(w2.shape, lambda i: (0, 0)),     #   VMEM-resident
            pl.BlockSpec(b2.shape, lambda i: (0, 0)),
        ],
        out_specs=pl.BlockSpec((2, blk), lambda i: (0, i)),
        compiler_params=pltpu.CompilerParams(
            dimension_semantics=("parallel",)),           # megacore split on v7x
    )(y_t, w1, b1, w2, b2)
    return out_t.T                                        # back to [B, 2]


def init_params(key):
    """Deterministic init mimicking torch.nn.Linear defaults:
    U(-1/sqrt(fan_in), 1/sqrt(fan_in)) for both weight and bias.
    Stored lane-dense-friendly: w1 [50,2] (out,in), b1 [50,1],
    w2 [50,2] (in,out), b2 [2,1]."""
    k1, k2, k3, k4 = jax.random.split(key, 4)
    bound1 = 1.0 / jnp.sqrt(2.0)    # fan_in = 2
    bound2 = 1.0 / jnp.sqrt(50.0)   # fan_in = 50
    w1 = jax.random.uniform(k1, (50, 2), jnp.float32, -bound1, bound1)
    b1 = jax.random.uniform(k2, (50, 1), jnp.float32, -bound1, bound1)
    w2 = jax.random.uniform(k3, (50, 2), jnp.float32, -bound2, bound2)
    b2 = jax.random.uniform(k4, (2, 1), jnp.float32, -bound2, bound2)
    return w1, b1, w2, b2


def _reference(y, params):
    w1, b1, w2, b2 = params
    h = jnp.tanh(jnp.dot(y, w1.T, precision="highest") + b1[:, 0])   # [B, 50]
    return jnp.dot(h, w2, precision="highest") + b2[:, 0]            # [B, 2]


if __name__ == "__main__":
    key = jax.random.PRNGKey(0)
    pkey, ykey, ykey2 = jax.random.split(key, 3)
    params = init_params(pkey)
    t = jnp.float32(0.0)  # unused, kept for interface parity with forward(t, y)

    # Small case (single block).
    batch = 8
    y = jax.random.normal(ykey, (batch, 2), jnp.float32)
    out = jax.block_until_ready(ode_func_base(t, y, params))
    assert out.shape == (batch, 2)
    assert jnp.allclose(out, _reference(y, params), atol=1e-5, rtol=1e-5), \
        "mismatch vs reference (small batch)"

    # Larger case exercising the batch grid + double-buffered pipeline.
    batch2 = 2048
    y2 = jax.random.normal(ykey2, (batch2, 2), jnp.float32)
    out2 = jax.block_until_ready(ode_func_base(t, y2, params))
    assert out2.shape == (batch2, 2)
    assert jnp.allclose(out2, _reference(y2, params), atol=1e-5, rtol=1e-5), \
        "mismatch vs reference (gridded batch)"

    print("KERNEL_OK")
</pallas_src>

<mosaic_0001>
module attributes {stable_mosaic.version = 11 : i64} {
  func.func @_mlp_kernel(%arg0: i32, %arg1: memref<2x8xf32, #tpu.memory_space<vmem>>, %arg2: memref<50x2xf32, #tpu.memory_space<vmem>>, %arg3: memref<50x1xf32, #tpu.memory_space<vmem>>, %arg4: memref<50x2xf32, #tpu.memory_space<vmem>>, %arg5: memref<2x1xf32, #tpu.memory_space<vmem>>, %arg6: memref<2x8xf32, #tpu.memory_space<vmem>>) attributes {dimension_semantics = [#tpu.dimension_semantics<parallel>], iteration_bounds = array<i64: 1>, scalar_prefetch = 0 : i64, scratch_operands = 0 : i64, tpu.core_type = #tpu.core_type<tc>, window_params = [{transform_indices = @transform_0, window_bounds = array<i64: 2, 8>}, {pipeline_mode = #tpu.pipeline_mode<synchronous>, transform_indices = @transform_1, window_bounds = array<i64: 50, 2>}, {pipeline_mode = #tpu.pipeline_mode<synchronous>, transform_indices = @transform_2, window_bounds = array<i64: 50, 1>}, {pipeline_mode = #tpu.pipeline_mode<synchronous>, transform_indices = @transform_3, window_bounds = array<i64: 50, 2>}, {pipeline_mode = #tpu.pipeline_mode<synchronous>, transform_indices = @transform_4, window_bounds = array<i64: 2, 1>}, {transform_indices = @transform_5, window_bounds = array<i64: 2, 8>}]} {
    %c0 = arith.constant 0 : index
    %c0_0 = arith.constant 0 : index
    %0 = vector.load %arg1[%c0, %c0_0] : memref<2x8xf32, #tpu.memory_space<vmem>>, vector<2x8xf32>
    %c0_1 = arith.constant 0 : index
    %c0_2 = arith.constant 0 : index
    %1 = vector.load %arg2[%c0_1, %c0_2] : memref<50x2xf32, #tpu.memory_space<vmem>>, vector<50x2xf32>
    %c0_3 = arith.constant 0 : index
    %c0_4 = arith.constant 0 : index
    %2 = vector.load %arg3[%c0_3, %c0_4] : memref<50x1xf32, #tpu.memory_space<vmem>>, vector<50x1xf32>
    %c0_5 = arith.constant 0 : index
    %c0_6 = arith.constant 0 : index
    %3 = vector.load %arg4[%c0_5, %c0_6] : memref<50x2xf32, #tpu.memory_space<vmem>>, vector<50x2xf32>
    %c0_7 = arith.constant 0 : index
    %c0_8 = arith.constant 0 : index
    %4 = vector.load %arg5[%c0_7, %c0_8] : memref<2x1xf32, #tpu.memory_space<vmem>>, vector<2x1xf32>
    %5 = vector.extract_strided_slice %1 {offsets = [0, 0], sizes = [50, 1], strides = [1, 1]} : vector<50x2xf32> to vector<50x1xf32>
    %6 = vector.extract_strided_slice %0 {offsets = [0, 0], sizes = [1, 8], strides = [1, 1]} : vector<2x8xf32> to vector<1x8xf32>
    %7 = vector.broadcast %5 : vector<50x1xf32> to vector<50x8xf32>
    %8 = vector.broadcast %6 : vector<1x8xf32> to vector<50x8xf32>
    %9 = arith.mulf %7, %8 : vector<50x8xf32>
    %10 = vector.extract_strided_slice %1 {offsets = [0, 1], sizes = [50, 1], strides = [1, 1]} : vector<50x2xf32> to vector<50x1xf32>
    %11 = vector.extract_strided_slice %0 {offsets = [1, 0], sizes = [1, 8], strides = [1, 1]} : vector<2x8xf32> to vector<1x8xf32>
    %12 = vector.broadcast %10 : vector<50x1xf32> to vector<50x8xf32>
    %13 = vector.broadcast %11 : vector<1x8xf32> to vector<50x8xf32>
    %14 = arith.mulf %12, %13 : vector<50x8xf32>
    %15 = arith.addf %9, %14 : vector<50x8xf32>
    %16 = vector.broadcast %2 : vector<50x1xf32> to vector<50x8xf32>
    %17 = arith.addf %15, %16 : vector<50x8xf32>
    %18 = math.tanh %17 : vector<50x8xf32>
    %19 = vector.extract_strided_slice %3 {offsets = [0, 0], sizes = [50, 1], strides = [1, 1]} : vector<50x2xf32> to vector<50x1xf32>
    %20 = vector.broadcast %19 : vector<50x1xf32> to vector<50x8xf32>
    %21 = arith.mulf %18, %20 : vector<50x8xf32>
    %cst = arith.constant dense<0.000000e+00> : vector<8xf32>
    %22 = vector.multi_reduction <add>, %21, %cst [0] : vector<50x8xf32> to vector<8xf32>
    %23 = vector.shape_cast %22 : vector<8xf32> to vector<1x8xf32>
    %24 = vector.extract_strided_slice %4 {offsets = [0, 0], sizes = [1, 1], strides = [1, 1]} : vector<2x1xf32> to vector<1x1xf32>
    %25 = vector.broadcast %24 : vector<1x1xf32> to vector<1x8xf32>
    %26 = arith.addf %23, %25 : vector<1x8xf32>
    %27 = vector.extract_strided_slice %3 {offsets = [0, 1], sizes = [50, 1], strides = [1, 1]} : vector<50x2xf32> to vector<50x1xf32>
    %28 = vector.broadcast %27 : vector<50x1xf32> to vector<50x8xf32>
    %29 = arith.mulf %18, %28 : vector<50x8xf32>
    %cst_9 = arith.constant dense<0.000000e+00> : vector<8xf32>
    %30 = vector.multi_reduction <add>, %29, %cst_9 [0] : vector<50x8xf32> to vector<8xf32>
    %31 = vector.shape_cast %30 : vector<8xf32> to vector<1x8xf32>
    %32 = vector.extract_strided_slice %4 {offsets = [1, 0], sizes = [1, 1], strides = [1, 1]} : vector<2x1xf32> to vector<1x1xf32>
    %33 = vector.broadcast %32 : vector<1x1xf32> to vector<1x8xf32>
    %34 = arith.addf %31, %33 : vector<1x8xf32>
    %c0_10 = arith.constant 0 : index
    %c0_11 = arith.constant 0 : index
    %35 = vector.load %arg6[%c0_10, %c0_11] : memref<2x8xf32, #tpu.memory_space<vmem>>, vector<1x8xf32>
    tpu.vector_store %arg6[%c0_10, %c0_11], %26 {strides = array<i32>} : memref<2x8xf32, #tpu.memory_space<vmem>>, vector<1x8xf32>,
    %c1 = arith.constant 1 : index
    %c0_12 = arith.constant 0 : index
    %36 = vector.load %arg6[%c1, %c0_12] : memref<2x8xf32, #tpu.memory_space<vmem>>, vector<1x8xf32>
    tpu.vector_store %arg6[%c1, %c0_12], %34 {strides = array<i32>} : memref<2x8xf32, #tpu.memory_space<vmem>>, vector<1x8xf32>,
    return
  }
  func.func @transform_0(%arg0: i32) -> (i32, i32) {
    %c0_i32 = arith.constant 0 : i32
    %c0_i32_0 = arith.constant 0 : i32
    return %c0_i32, %arg0 : i32, i32
  }
  func.func @transform_1(%arg0: i32) -> (i32, i32) {
    %c0_i32 = arith.constant 0 : i32
    %c0_i32_0 = arith.constant 0 : i32
    %c0_i32_1 = arith.constant 0 : i32
    return %c0_i32, %c0_i32_0 : i32, i32
  }
  func.func @transform_2(%arg0: i32) -> (i32, i32) {
    %c0_i32 = arith.constant 0 : i32
    %c0_i32_0 = arith.constant 0 : i32
    %c0_i32_1 = arith.constant 0 : i32
    return %c0_i32, %c0_i32_0 : i32, i32
  }
  func.func @transform_3(%arg0: i32) -> (i32, i32) {
    %c0_i32 = arith.constant 0 : i32
    %c0_i32_0 = arith.constant 0 : i32
    %c0_i32_1 = arith.constant 0 : i32
    return %c0_i32, %c0_i32_0 : i32, i32
  }
  func.func @transform_4(%arg0: i32) -> (i32, i32) {
    %c0_i32 = arith.constant 0 : i32
    %c0_i32_0 = arith.constant 0 : i32
    %c0_i32_1 = arith.constant 0 : i32
    return %c0_i32, %c0_i32_0 : i32, i32
  }
  func.func @transform_5(%arg0: i32) -> (i32, i32) {
    %c0_i32 = arith.constant 0 : i32
    %c0_i32_0 = arith.constant 0 : i32
    return %c0_i32, %arg0 : i32, i32
  }
}

</mosaic_0001>

<llo_original>
// kernel: tpu_custom_call.1
$region0: #{tpu_custom_call.1}
  #allocation0 [shape = 'u32[]', space=smem, size = 0x4, offset = 0x4, fixed_abs, tag = 'smem constant byte address 0x4 - core index']
  #allocation1 [shape = 'u32[144,128]{1,0:T(1,128)}', space=vmem, size = 0x12000, scoped, tag = 'internal scratch']
  %s0 = inlined_call_operand.vmem [shape: f32[2,8], index: 0, kind: input, shape index: {}]
  %s1 = inlined_call_operand.vmem [shape: f32[50,2], index: 1, kind: input, shape index: {}]
  %s2 = inlined_call_operand.vmem [shape: f32[50,1], index: 2, kind: input, shape index: {}]
  %s3 = inlined_call_operand.vmem [shape: f32[50,2], index: 3, kind: input, shape index: {}]
  %s4 = inlined_call_operand.vmem [shape: f32[2,1], index: 4, kind: input, shape index: {}]
  %s5 = inlined_call_operand.hbm [shape: f32[2,8], index: 5, kind: output, shape index: {}]
  %s6 = sld [smem:[#allocation0]]
  $region30: #{tpu_custom_call.1} parent=0
    _
  %s8 = ssub.s32 1, %s6
  %s9 = scalar_select 0, %s8, %s6
  $region1: #{tpu_custom_call.1} parent=0
    #allocation2 [shape = 'u8[1024]{0}', space=vmem, size = 0x400, scoped, tag = 'output window, operand 0, single buffered']
    #allocation3 [shape = 's32[1]{0}', space=sflag, size = 0x4, scoped, tag = 'scoped memory for tpu_custom_call.1']
    %10 = vsyncpa [#allocation3], 0
    // Predicated region
    $region2: #{tpu_custom_call.1} parent=1 // pred_check
      _
    $region3: #{tpu_custom_call.1} parent=1 // pred_check_branch
      %12 = sbr.rel (0) target = $region5
    $region4: #{tpu_custom_call.1} parent=1 // pred_region
      _
    $region5: #{tpu_custom_call.1} parent=1 // pred_fallthru
      _
    // Predicated region
    $region6: #{tpu_custom_call.1} parent=1 // pred_check
      _
    $region7: #{tpu_custom_call.1} parent=1 // pred_check_branch
      %14 = sbr.rel (0) target = $region9
    $region8: #{tpu_custom_call.1} parent=1 // pred_region
      _
    $region9: #{tpu_custom_call.1} parent=1 // pred_fallthru
      _
    // Predicated region
    $region10: #{tpu_custom_call.1} parent=1 // pred_check
      _
    $region11: #{tpu_custom_call.1} parent=1 // pred_check_branch
      %16 = sbr.rel (0) target = $region13
    $region12: #{tpu_custom_call.1} parent=1 // pred_region
      _
    $region13: #{tpu_custom_call.1} parent=1 // pred_fallthru
      _
    // Predicated region
    $region14: #{tpu_custom_call.1} parent=1 // pred_check
      _
    $region15: #{tpu_custom_call.1} parent=1 // pred_check_branch
      %18 = sbr.rel (0) target = $region17
    $region16: #{tpu_custom_call.1} parent=1 // pred_region
      _
    $region17: #{tpu_custom_call.1} parent=1 // pred_fallthru
      _
    // Predicated region
    $region18: #{tpu_custom_call.1} parent=1 // pred_check
      _
    $region19: #{tpu_custom_call.1} parent=1 // pred_check_branch
      %20 = sbr.rel (0) target = $region21
    $region20: #{tpu_custom_call.1} parent=1 // pred_region
      _
    $region21: #{tpu_custom_call.1} parent=1 // pred_fallthru
      _
    %v21 = vld [vmem:[%s0] sm:$0x3]
    %v22 = vld [vmem:[%s1] sm:$0xff]
    %v23 = vld [vmem:[%s1 + $0x8] sm:$0xff]
    %v24 = vld [vmem:[%s1 + $0x10] sm:$0xff]
    %v25 = vld [vmem:[%s1 + $0x18] sm:$0xff]
    %v26 = vld [vmem:[%s1 + $0x20] sm:$0xff]
    %v27 = vld [vmem:[%s1 + $0x28] sm:$0xff]
    %v28 = vld [vmem:[%s1 + $0x30] sm:$0x3]
    %v29 = vld [vmem:[%s2] sm:$0xff]
    %v30 = vld [vmem:[%s2 + $0x8] sm:$0xff]
    %v31 = vld [vmem:[%s2 + $0x10] sm:$0xff]
    %v32 = vld [vmem:[%s2 + $0x18] sm:$0xff]
    %v33 = vld [vmem:[%s2 + $0x20] sm:$0xff]
    %v34 = vld [vmem:[%s2 + $0x28] sm:$0xff]
    %v35 = vld [vmem:[%s2 + $0x30] sm:$0x3]
    %v36 = vld [vmem:[%s3] sm:$0xff]
    %v37 = vld [vmem:[%s3 + $0x8] sm:$0xff]
    %v38 = vld [vmem:[%s3 + $0x10] sm:$0xff]
    %v39 = vld [vmem:[%s3 + $0x18] sm:$0xff]
    %v40 = vld [vmem:[%s3 + $0x20] sm:$0xff]
    %v41 = vld [vmem:[%s3 + $0x28] sm:$0xff]
    %v42 = vld [vmem:[%s3 + $0x30] sm:$0x3]
    %v43 = vld [vmem:[%s4] sm:$0x3]
    %45 = vset.pattern.permute.xlu0 0
    %46 = vperm.xlu0 %45, %v22
    %v47 = vpop.permute.xlu0 %46
    %50 = vset.pattern.permute.xlu0 0
    %51 = vperm.xlu0 %50, %v23
    %v52 = vpop.permute.xlu0 %51
    %55 = vset.pattern.permute.xlu0 0
    %56 = vperm.xlu0 %55, %v24
    %v57 = vpop.permute.xlu0 %56
    %60 = vset.pattern.permute.xlu0 0
    %61 = vperm.xlu0 %60, %v25
    %v62 = vpop.permute.xlu0 %61
    %65 = vset.pattern.permute.xlu0 0
    %66 = vperm.xlu0 %65, %v26
    %v67 = vpop.permute.xlu0 %66
    %70 = vset.pattern.permute.xlu0 0
    %71 = vperm.xlu0 %70, %v27
    %v72 = vpop.permute.xlu0 %71
    %75 = vset.pattern.permute.xlu0 0
    %76 = vperm.xlu0 %75, %v28
    %v77 = vpop.permute.xlu0 %76
    %v79 = vlaneseq
    %v80 = vshrl.u32 %v79, 7
    %v81 = vsub.s32 0, %v80
    %v82 = vrot.slane %v21, %v81
    %v83 = vmul.f32 %v47, %v82
    %v84 = vmul.f32 %v52, %v82
    %v85 = vmul.f32 %v57, %v82
    %v86 = vmul.f32 %v62, %v82
    %v87 = vmul.f32 %v67, %v82
    %v88 = vmul.f32 %v72, %v82
    %v89 = vmul.f32 %v77, %v82
    %90 = vset.pattern.permute.xlu0 1
    %91 = vperm.xlu0 %90, %v22
    %v92 = vpop.permute.xlu0 %91
    %94 = vset.pattern.permute.xlu0 1
    %95 = vperm.xlu0 %94, %v23
    %v96 = vpop.permute.xlu0 %95
    %98 = vset.pattern.permute.xlu0 1
    %99 = vperm.xlu0 %98, %v24
    %v100 = vpop.permute.xlu0 %99
    %102 = vset.pattern.permute.xlu0 1
    %103 = vperm.xlu0 %102, %v25
    %v104 = vpop.permute.xlu0 %103
    %106 = vset.pattern.permute.xlu0 1
    %107 = vperm.xlu0 %106, %v26
    %v108 = vpop.permute.xlu0 %107
    %110 = vset.pattern.permute.xlu0 1
    %111 = vperm.xlu0 %110, %v27
    %v112 = vpop.permute.xlu0 %111
    %114 = vset.pattern.permute.xlu0 1
    %115 = vperm.xlu0 %114, %v28
    %v116 = vpop.permute.xlu0 %115
    %v118 = vlaneseq
    %v119 = vshrl.u32 %v118, 7
    %v120 = vsub.s32 1, %v119
    %v121 = vrot.slane %v21, %v120
    %v122 = vmul.f32 %v92, %v121
    %v123 = vmul.f32 %v96, %v121
    %v124 = vmul.f32 %v100, %v121
    %v125 = vmul.f32 %v104, %v121
    %v126 = vmul.f32 %v108, %v121
    %v127 = vmul.f32 %v112, %v121
    %v128 = vmul.f32 %v116, %v121
    %v129 = vadd.f32 %v83, %v122
    %v130 = vadd.f32 %v84, %v123
    %v131 = vadd.f32 %v85, %v124
    %v132 = vadd.f32 %v86, %v125
    %v133 = vadd.f32 %v87, %v126
    %v134 = vadd.f32 %v88, %v127
    %v135 = vadd.f32 %v89, %v128
    %137 = vset.pattern.permute.xlu0 0
    %138 = vperm.xlu0 %137, %v29
    %v139 = vpop.permute.xlu0 %138
    %142 = vset.pattern.permute.xlu0 0
    %143 = vperm.xlu0 %142, %v30
    %v144 = vpop.permute.xlu0 %143
    %147 = vset.pattern.permute.xlu0 0
    %148 = vperm.xlu0 %147, %v31
    %v149 = vpop.permute.xlu0 %148
    %152 = vset.pattern.permute.xlu0 0
    %153 = vperm.xlu0 %152, %v32
    %v154 = vpop.permute.xlu0 %153
    %157 = vset.pattern.permute.xlu0 0
    %158 = vperm.xlu0 %157, %v33
    %v159 = vpop.permute.xlu0 %158
    %162 = vset.pattern.permute.xlu0 0
    %163 = vperm.xlu0 %162, %v34
    %v164 = vpop.permute.xlu0 %163
    %167 = vset.pattern.permute.xlu0 0
    %168 = vperm.xlu0 %167, %v35
    %v169 = vpop.permute.xlu0 %168
    %v171 = vadd.f32 %v129, %v139
    %v172 = vadd.f32 %v130, %v144
    %v173 = vadd.f32 %v131, %v149
    %v174 = vadd.f32 %v132, %v154
    %v175 = vadd.f32 %v133, %v159
    %v176 = vadd.f32 %v134, %v164
    %v177 = vadd.f32 %v135, %v169
    %v178 = vtanh.pop %v171
    %v179 = vtanh.pop %v172
    %v180 = vtanh.pop %v173
    %v181 = vtanh.pop %v174
    %v182 = vtanh.pop %v175
    %v183 = vtanh.pop %v176
    %v184 = vtanh.pop %v177
    %186 = vset.pattern.permute.xlu0 0
    %187 = vperm.xlu0 %186, %v36
    %v188 = vpop.permute.xlu0 %187
    %191 = vset.pattern.permute.xlu0 0
    %192 = vperm.xlu0 %191, %v37
    %v193 = vpop.permute.xlu0 %192
    %196 = vset.pattern.permute.xlu0 0
    %197 = vperm.xlu0 %196, %v38
    %v198 = vpop.permute.xlu0 %197
    %201 = vset.pattern.permute.xlu0 0
    %202 = vperm.xlu0 %201, %v39
    %v203 = vpop.permute.xlu0 %202
    %206 = vset.pattern.permute.xlu0 0
    %207 = vperm.xlu0 %206, %v40
    %v208 = vpop.permute.xlu0 %207
    %211 = vset.pattern.permute.xlu0 0
    %212 = vperm.xlu0 %211, %v41
    %v213 = vpop.permute.xlu0 %212
    %216 = vset.pattern.permute.xlu0 0
    %217 = vperm.xlu0 %216, %v42
    %v218 = vpop.permute.xlu0 %217
    %v220 = vmul.f32 %v178, %v188
    %v221 = vmul.f32 %v179, %v193
    %v222 = vmul.f32 %v180, %v198
    %v223 = vmul.f32 %v181, %v203
    %v224 = vmul.f32 %v182, %v208
    %v225 = vmul.f32 %v183, %v213
    %v226 = vmul.f32 %v184, %v218
    %vm227 = vcmask 64512
    %v228 = vsel %vm227, %v220, 0.0
    %v229 = vsel %vm227, %v221, 0.0
    %v230 = vadd.f32 %v228, %v229
    %v231 = vsel %vm227, %v222, 0.0
    %v232 = vadd.f32 %v230, %v231
    %v233 = vsel %vm227, %v223, 0.0
    %v234 = vadd.f32 %v232, %v233
    %v235 = vsel %vm227, %v224, 0.0
    %v236 = vadd.f32 %v234, %v235
    %v237 = vsel %vm227, %v225, 0.0
    %v238 = vadd.f32 %v236, %v237
    %vm239 = vcmask 58368
    %v240 = vsel %vm239, %v226, 0.0
    %v241 = vadd.f32 %v238, %v240
    %v242 = vrot.slane %v241, 4
    %v243 = vadd.f32 %v241, %v242
    %v244 = vrot.slane %v243, 2
    %v245 = vadd.f32 %v243, %v244
    %v246 = vrot.slane %v245, 1
    %v247 = vadd.f32 %v245, %v246
    %249 = vset.pattern.permute.xlu0 0
    %250 = vperm.xlu0 %249, %v43
    %v251 = vpop.permute.xlu0 %250
    %v253 = vadd.f32 %v247, %v251
    %254 = vset.pattern.permute.xlu0 1
    %255 = vperm.xlu0 %254, %v36
    %v256 = vpop.permute.xlu0 %255
    %258 = vset.pattern.permute.xlu0 1
    %259 = vperm.xlu0 %258, %v37
    %v260 = vpop.permute.xlu0 %259
    %262 = vset.pattern.permute.xlu0 1
    %263 = vperm.xlu0 %262, %v38
    %v264 = vpop.permute.xlu0 %263
    %266 = vset.pattern.permute.xlu0 1
    %267 = vperm.xlu0 %266, %v39
    %v268 = vpop.permute.xlu0 %267
    %270 = vset.pattern.permute.xlu0 1
    %271 = vperm.xlu0 %270, %v40
    %v272 = vpop.permute.xlu0 %271
    %274 = vset.pattern.permute.xlu0 1
    %275 = vperm.xlu0 %274, %v41
    %v276 = vpop.permute.xlu0 %275
    %278 = vset.pattern.permute.xlu0 1
    %279 = vperm.xlu0 %278, %v42
    %v280 = vpop.permute.xlu0 %279
    %v282 = vmul.f32 %v178, %v256
    %v283 = vmul.f32 %v179, %v260
    %v284 = vmul.f32 %v180, %v264
    %v285 = vmul.f32 %v181, %v268
    %v286 = vmul.f32 %v182, %v272
    %v287 = vmul.f32 %v183, %v276
    %v288 = vmul.f32 %v184, %v280
    %v289 = vsel %vm227, %v282, 0.0
    %v290 = vsel %vm227, %v283, 0.0
    %v291 = vadd.f32 %v289, %v290
    %v292 = vsel %vm227, %v284, 0.0
    %v293 = vadd.f32 %v291, %v292
    %v294 = vsel %vm227, %v285, 0.0
    %v295 = vadd.f32 %v293, %v294
    %v296 = vsel %vm227, %v286, 0.0
    %v297 = vadd.f32 %v295, %v296
    %v298 = vsel %vm227, %v287, 0.0
    %v299 = vadd.f32 %v297, %v298
    %v300 = vsel %vm239, %v288, 0.0
    %v301 = vadd.f32 %v299, %v300
    %v302 = vrot.slane %v301, 4
    %v303 = vadd.f32 %v301, %v302
    %v304 = vrot.slane %v303, 2
    %v305 = vadd.f32 %v303, %v304
    %v306 = vrot.slane %v305, 1
    %v307 = vadd.f32 %v305, %v306
    %v308 = vadd.f32 %v307, %v251
    %vm309 = vcmask 57344
    %310 = vst.msk [vmem:[#allocation2] sm:$0x1] %vm309, %v253
    %vm311 = vcmask 58369
    %312 = vst.msk [vmem:[#allocation2] sm:$0x2] %vm311, %v308
    // Predicated region
    $region22: #{tpu_custom_call.1} parent=1 // pred_check
      _
    $region23: #{tpu_custom_call.1} parent=1 // pred_check_branch
      %314 = sbr.rel (0) target = $region25
    $region24: #{tpu_custom_call.1} parent=1 // pred_region
      %s316 = ssub.s32 32, 32
      %317 = vsyncadd [#allocation3], %s316
      %s319 = sshll.u32 [#allocation2], 4
      %s320 = int_to_ptr.vmem [resolvable:$true] %s319
      %322 = dma.vmem_to_hbm [thread:$0]  %s320, 32, %s5, [#allocation3]
    $region25: #{tpu_custom_call.1} parent=1 // pred_fallthru
      _
    // Predicated region
    $region26: #{tpu_custom_call.1} parent=1 // pred_check
      _
    $region27: #{tpu_custom_call.1} parent=1 // pred_check_branch
      %324 = sbr.rel (0) target = $region29
    $region28: #{tpu_custom_call.1} parent=1 // pred_region
      %325 = dma.done [#allocation3], 32
    $region29: #{tpu_custom_call.1} parent=1 // pred_fallthru
      _
    %326 = vsyncpa [#allocation3], 1

</llo_original>
